<compile_context>
chip_gen: v7x
topology: tpu7x:2x2x1
jax: 0.10.0
libtpu: 0.0.40
codegen_flags: <defaults>
</compile_context>

<pallas_src>
import jax
import jax.numpy as jnp
from jax.experimental import pallas as pl
from jax.experimental.pallas import tpu as pltpu


def _round_up(n, m):
    return ((n + m - 1) // m) * m


def _dnn_kernel(x_ref, w1_ref, b1_ref, w2_ref, b2_ref, w3_ref, b3_ref, out_ref):
    # x: [TM, F] in its input dtype.  Eval-mode BatchNorm is already folded
    # into (w1, b1).  In-kernel bf16 cast avoids a wrapper-side HBM pass.
    x = x_ref[...].astype(jnp.bfloat16)

    # ---- fc1 + ReLU (MXU, bf16 in / f32 accumulate) ------------------------
    h1 = jnp.dot(x, w1_ref[...], preferred_element_type=jnp.float32)
    h1 = jnp.maximum(h1 + b1_ref[...], 0.0)                     # [TM, H] f32
    # dropout1: identity in eval mode

    # ---- fc2 + ReLU ---------------------------------------------------------
    h2 = jnp.dot(h1.astype(jnp.bfloat16), w2_ref[...],
                 preferred_element_type=jnp.float32)
    h2 = jnp.maximum(h2 + b2_ref[...], 0.0)                     # [TM, H] f32
    # dropout2: identity in eval mode

    # ---- fc3: output width 1 -> VPU multiply + lane reduction ---------------
    # (avoids a nearly-empty MXU pass; b3 is a scalar read from SMEM)
    y = jnp.sum(h2 * w3_ref[...], axis=-1, keepdims=True) + b3_ref[0]
    out_ref[...] = y.astype(out_ref.dtype)                      # [TM, 1]
    # TODO(synk): if profiling ever shows the 1-lane writeback exposed, emit a
    # lane-dense (1, TM) row per tile instead; output traffic is only B*4
    # bytes vs. the B*F*4 input stream, so it is negligible here.


def fold_params(params, eps=1e-5):
    """One-time constant transform: fold eval-mode BN into fc1, cast MXU
    weights to bf16, reshape fc3 weight to a [1, H] row for the VPU."""
    scale = params["gamma"] * jax.lax.rsqrt(params["var"] + eps)    # [1, F]
    shift = params["beta"] - params["mean"] * scale                 # [1, F]
    F_, H = params["w1"].shape
    w1f = scale.reshape(F_, 1) * params["w1"]                       # [F, H]
    b1f = params["b1"] + shift @ params["w1"]                       # [1, H]
    return {
        "w1": w1f.astype(jnp.bfloat16),
        "b1": b1f.astype(jnp.float32),
        "w2": params["w2"].astype(jnp.bfloat16),
        "b2": params["b2"].astype(jnp.float32),
        "w3_row": params["w3"].reshape(1, H).astype(jnp.float32),   # [1, H]
        "b3": params["b3"].reshape(1).astype(jnp.float32),          # [1] -> SMEM
    }


def _choose_tm(Bp, F, itemsize):
    """Pick the batch-tile row count from a VMEM budget.

    x stays in its input dtype in the pipeline (cast happens in-kernel) and is
    double-buffered.  An 8 MiB budget for the x buffers leaves plenty of
    headroom (weights + f32 intermediates) inside v5e's 16 MiB scoped-VMEM
    default and well inside v7x's 64 MiB physical VMEM, so no vmem_limit
    override is needed.
    """
    budget = 8 << 20
    per_row = 2 * F * itemsize                     # double-buffered x rows
    tm = max(256, (budget // per_row) // 256 * 256)
    tm = min(tm, 2048)                             # >=1 MiB f32 tiles for F>=128
    # Keep >=2 grid steps for large batches so ("parallel",) can shard the
    # batch across both TensorCores on v7x (no-op on single-TC v5e/v6e).
    if Bp >= 512:
        tm = min(tm, _round_up(pl.cdiv(Bp, 2), 8))
    tm = min(tm, Bp)
    return tm


def dnn_forward(x, folded):
    """x: [B, ...] (flattened to [B, F]); folded: output of fold_params."""
    B = x.shape[0]
    x2d = x.reshape(B, -1)                 # flatten; no dtype cast, no tile pad
    F_ = x2d.shape[1]

    # Pad only up to a multiple of 8 (sublane) if needed -- at most 7 rows and
    # usually a no-op.  The last grid block may be partial; rows are
    # independent so the extra rows are discarded by the slice at the end.
    Bp = _round_up(B, 8)
    if Bp != B:
        x2d = jnp.pad(x2d, ((0, Bp - B), (0, 0)))

    tm = _choose_tm(Bp, F_, x2d.dtype.itemsize)
    grid = (pl.cdiv(Bp, tm),)

    def const_spec(a):
        return pl.BlockSpec(a.shape, lambda i: (0,) * a.ndim)

    out = pl.pallas_call(
        _dnn_kernel,
        out_shape=jax.ShapeDtypeStruct((Bp, 1), jnp.float32),
        grid=grid,
        in_specs=[
            pl.BlockSpec((tm, F_), lambda i: (i, 0)),            # x: batch-tiled
            const_spec(folded["w1"]),                            # resident weights
            const_spec(folded["b1"]),
            const_spec(folded["w2"]),
            const_spec(folded["b2"]),
            const_spec(folded["w3_row"]),
            pl.BlockSpec(memory_space=pltpu.MemorySpace.SMEM),   # b3 scalar
        ],
        out_specs=pl.BlockSpec((tm, 1), lambda i: (i, 0)),
        compiler_params=pltpu.CompilerParams(
            dimension_semantics=("parallel",),                   # 2-TC on v7x
        ),
    )(x2d, folded["w1"], folded["b1"], folded["w2"], folded["b2"],
      folded["w3_row"], folded["b3"])

    return out[:B]


def init_params(key, input_size, hidden_size=128):
    """Deterministic synthetic parameters (shapes from DNN.__init__)."""
    ks = jax.random.split(key, 6)

    def linear(kw, kb, fan_in, fan_out):
        bound = 1.0 / jnp.sqrt(fan_in)
        # PyTorch Linear weight is [out, in]; store transposed [in, out].
        w = jax.random.uniform(kw, (fan_in, fan_out), jnp.float32, -bound, bound)
        b = jax.random.uniform(kb, (1, fan_out), jnp.float32, -bound, bound)
        return w, b

    w1, b1 = linear(ks[0], ks[1], input_size, hidden_size)
    w2, b2 = linear(ks[2], ks[3], hidden_size, hidden_size)
    w3, b3 = linear(ks[4], ks[5], hidden_size, 1)

    return {
        # BatchNorm1d(input_size): gamma=1, beta=0, running_mean=0, running_var=1
        "gamma": jnp.ones((1, input_size), jnp.float32),
        "beta": jnp.zeros((1, input_size), jnp.float32),
        "mean": jnp.zeros((1, input_size), jnp.float32),
        "var": jnp.ones((1, input_size), jnp.float32),
        "w1": w1, "b1": b1,
        "w2": w2, "b2": b2,
        "w3": w3, "b3": b3,
    }


def dnn_reference(x, params):
    """Pure-JAX f32 reference of the eval-mode forward pass (module semantics)."""
    B = x.shape[0]
    x = x.reshape(B, -1).astype(jnp.float32)
    eps = 1e-5
    x = (x - params["mean"]) * jax.lax.rsqrt(params["var"] + eps) \
        * params["gamma"] + params["beta"]
    h = jnp.maximum(x @ params["w1"] + params["b1"], 0.0)
    h = jnp.maximum(h @ params["w2"] + params["b2"], 0.0)
    return h @ params["w3"] + params["b3"]


if __name__ == "__main__":
    key = jax.random.PRNGKey(0)
    k_x, k_p = jax.random.split(key)

    # Input consistent with the module: any [B, ...] tensor flattened to
    # input_size features.  Small shapes: batch=8, 16x16 -> 256 features,
    # hidden=128.
    batch, side, hidden = 8, 16, 128
    input_size = side * side
    x = jax.random.normal(k_x, (batch, side, side), jnp.float32)
    params = init_params(k_p, input_size, hidden)

    # NOTE: folding eval-mode BN into fc1 means the *raw* input is what gets
    # cast to bf16 inside the kernel; fine for N(0,1) inputs (and this test's
    # identity BN), validate tolerance on representative data if features have
    # large means/scales.
    folded = fold_params(params)             # one-time constant fold (BN -> fc1)
    out = dnn_forward(x, folded)
    out = jax.block_until_ready(out)

    ref = dnn_reference(x, params)
    assert out.shape == (batch, 1), out.shape
    # bf16 MXU operands with f32 accumulation -> loose tolerance vs f32 reference.
    max_err = float(jnp.max(jnp.abs(out - ref)))
    assert jnp.allclose(out, ref, atol=3e-2, rtol=3e-2), max_err

    print("KERNEL_OK")
</pallas_src>

<mosaic_0001>
module attributes {stable_mosaic.version = 11 : i64} {
  func.func @_dnn_kernel(%arg0: i32, %arg1: memref<8x256xf32, #tpu.memory_space<vmem>>, %arg2: memref<256x128xbf16, #tpu.memory_space<vmem>>, %arg3: memref<1x128xf32, #tpu.memory_space<vmem>>, %arg4: memref<128x128xbf16, #tpu.memory_space<vmem>>, %arg5: memref<1x128xf32, #tpu.memory_space<vmem>>, %arg6: memref<1x128xf32, #tpu.memory_space<vmem>>, %arg7: memref<1xf32, #tpu.memory_space<smem>>, %arg8: memref<8x1xf32, #tpu.memory_space<vmem>>) attributes {dimension_semantics = [#tpu.dimension_semantics<parallel>], iteration_bounds = array<i64: 1>, scalar_prefetch = 0 : i64, scratch_operands = 0 : i64, tpu.core_type = #tpu.core_type<tc>, window_params = [{transform_indices = @transform_0, window_bounds = array<i64: 8, 256>}, {pipeline_mode = #tpu.pipeline_mode<synchronous>, transform_indices = @transform_1, window_bounds = array<i64: 256, 128>}, {pipeline_mode = #tpu.pipeline_mode<synchronous>, transform_indices = @transform_2, window_bounds = array<i64: 1, 128>}, {pipeline_mode = #tpu.pipeline_mode<synchronous>, transform_indices = @transform_3, window_bounds = array<i64: 128, 128>}, {pipeline_mode = #tpu.pipeline_mode<synchronous>, transform_indices = @transform_4, window_bounds = array<i64: 1, 128>}, {pipeline_mode = #tpu.pipeline_mode<synchronous>, transform_indices = @transform_5, window_bounds = array<i64: 1, 128>}, {transform_indices = @transform_6, window_bounds = array<i64: 1>}, {transform_indices = @transform_7, window_bounds = array<i64: 8, 1>}]} {
    %c0 = arith.constant 0 : index
    %c0_0 = arith.constant 0 : index
    %0 = vector.load %arg1[%c0, %c0_0] : memref<8x256xf32, #tpu.memory_space<vmem>>, vector<8x256xf32>
    %1 = arith.truncf %0 : vector<8x256xf32> to vector<8x256xbf16>
    %c0_1 = arith.constant 0 : index
    %c0_2 = arith.constant 0 : index
    %2 = vector.load %arg2[%c0_1, %c0_2] : memref<256x128xbf16, #tpu.memory_space<vmem>>, vector<256x128xbf16>
    %cst = arith.constant dense<0.000000e+00> : vector<8x128xf32>
    %3 = tpu.matmul %1, %2, %cst {dimension_numbers = #tpu.dot_dimension_numbers<[1], [0], [0], [1], [0, 0, 1, 1], [], []>} : vector<8x256xbf16>, vector<256x128xbf16>, vector<8x128xf32> -> vector<8x128xf32>
    %c0_3 = arith.constant 0 : index
    %c0_4 = arith.constant 0 : index
    %4 = vector.load %arg3[%c0_3, %c0_4] : memref<1x128xf32, #tpu.memory_space<vmem>>, vector<1x128xf32>
    %5 = vector.broadcast %4 : vector<1x128xf32> to vector<8x128xf32>
    %6 = arith.addf %3, %5 : vector<8x128xf32>
    %cst_5 = arith.constant 0.000000e+00 : f32
    %7 = vector.broadcast %cst_5 : f32 to vector<8x128xf32>
    %8 = arith.maximumf %6, %7 : vector<8x128xf32>
    %9 = arith.truncf %8 : vector<8x128xf32> to vector<8x128xbf16>
    %c0_6 = arith.constant 0 : index
    %c0_7 = arith.constant 0 : index
    %10 = vector.load %arg4[%c0_6, %c0_7] : memref<128x128xbf16, #tpu.memory_space<vmem>>, vector<128x128xbf16>
    %cst_8 = arith.constant dense<0.000000e+00> : vector<8x128xf32>
    %11 = tpu.matmul %9, %10, %cst_8 {dimension_numbers = #tpu.dot_dimension_numbers<[1], [0], [0], [1], [0, 0, 1, 1], [], []>} : vector<8x128xbf16>, vector<128x128xbf16>, vector<8x128xf32> -> vector<8x128xf32>
    %c0_9 = arith.constant 0 : index
    %c0_10 = arith.constant 0 : index
    %12 = vector.load %arg5[%c0_9, %c0_10] : memref<1x128xf32, #tpu.memory_space<vmem>>, vector<1x128xf32>
    %13 = vector.broadcast %12 : vector<1x128xf32> to vector<8x128xf32>
    %14 = arith.addf %11, %13 : vector<8x128xf32>
    %cst_11 = arith.constant 0.000000e+00 : f32
    %15 = vector.broadcast %cst_11 : f32 to vector<8x128xf32>
    %16 = arith.maximumf %14, %15 : vector<8x128xf32>
    %c0_12 = arith.constant 0 : index
    %c0_13 = arith.constant 0 : index
    %17 = vector.load %arg6[%c0_12, %c0_13] : memref<1x128xf32, #tpu.memory_space<vmem>>, vector<1x128xf32>
    %18 = vector.broadcast %17 : vector<1x128xf32> to vector<8x128xf32>
    %19 = arith.mulf %16, %18 : vector<8x128xf32>
    %cst_14 = arith.constant dense<0.000000e+00> : vector<8xf32>
    %20 = vector.multi_reduction <add>, %19, %cst_14 [1] : vector<8x128xf32> to vector<8xf32>
    %21 = vector.shape_cast %20 : vector<8xf32> to vector<8x1xf32>
    %c0_15 = arith.constant 0 : index
    %22 = memref.load %arg7[%c0_15] : memref<1xf32, #tpu.memory_space<smem>>
    %23 = vector.broadcast %22 : f32 to vector<8x1xf32>
    %24 = arith.addf %21, %23 : vector<8x1xf32>
    %c0_16 = arith.constant 0 : index
    %c0_17 = arith.constant 0 : index
    %25 = vector.load %arg8[%c0_16, %c0_17] : memref<8x1xf32, #tpu.memory_space<vmem>>, vector<8x1xf32>
    tpu.vector_store %arg8[%c0_16, %c0_17], %24 {strides = array<i32>} : memref<8x1xf32, #tpu.memory_space<vmem>>, vector<8x1xf32>,
    return
  }
  func.func @transform_0(%arg0: i32) -> (i32, i32) {
    %c0_i32 = arith.constant 0 : i32
    %c0_i32_0 = arith.constant 0 : i32
    return %arg0, %c0_i32 : i32, i32
  }
  func.func @transform_1(%arg0: i32) -> (i32, i32) {
    %c0_i32 = arith.constant 0 : i32
    %c0_i32_0 = arith.constant 0 : i32
    %c0_i32_1 = arith.constant 0 : i32
    return %c0_i32, %c0_i32_0 : i32, i32
  }
  func.func @transform_2(%arg0: i32) -> (i32, i32) {
    %c0_i32 = arith.constant 0 : i32
    %c0_i32_0 = arith.constant 0 : i32
    %c0_i32_1 = arith.constant 0 : i32
    return %c0_i32, %c0_i32_0 : i32, i32
  }
  func.func @transform_3(%arg0: i32) -> (i32, i32) {
    %c0_i32 = arith.constant 0 : i32
    %c0_i32_0 = arith.constant 0 : i32
    %c0_i32_1 = arith.constant 0 : i32
    return %c0_i32, %c0_i32_0 : i32, i32
  }
  func.func @transform_4(%arg0: i32) -> (i32, i32) {
    %c0_i32 = arith.constant 0 : i32
    %c0_i32_0 = arith.constant 0 : i32
    %c0_i32_1 = arith.constant 0 : i32
    return %c0_i32, %c0_i32_0 : i32, i32
  }
  func.func @transform_5(%arg0: i32) -> (i32, i32) {
    %c0_i32 = arith.constant 0 : i32
    %c0_i32_0 = arith.constant 0 : i32
    %c0_i32_1 = arith.constant 0 : i32
    return %c0_i32, %c0_i32_0 : i32, i32
  }
  func.func @transform_6(%arg0: i32) -> i32 {
    %c0_i32 = arith.constant 0 : i32
    %c0_i32_0 = arith.constant 0 : i32
    return %c0_i32 : i32
  }
  func.func @transform_7(%arg0: i32) -> (i32, i32) {
    %c0_i32 = arith.constant 0 : i32
    %c0_i32_0 = arith.constant 0 : i32
    return %arg0, %c0_i32 : i32, i32
  }
}

</mosaic_0001>

<llo_original>
// kernel: tpu_custom_call.1
$region0: #{tpu_custom_call.1}
  #allocation0 [shape = 'u32[]', space=smem, size = 0x4, offset = 0x4, fixed_abs, tag = 'smem constant byte address 0x4 - core index']
  #allocation1 [shape = 'u32[144,128]{1,0:T(1,128)}', space=vmem, size = 0x12000, scoped, tag = 'internal scratch']
  #allocation2 [shape = 'f32[1]{0:T(128)S(6)}', space=smem, size = 0x200, scoped, tag = 'scoped memory for tpu_custom_call.1']
  %s0 = inlined_call_operand.hbm [shape: f32[8,256], index: 0, kind: input, shape index: {}]
  %s1 = inlined_call_operand.hbm [shape: bf16[256,128], index: 1, kind: input, shape index: {}]
  %s2 = inlined_call_operand.vmem [shape: f32[1,128], index: 2, kind: input, shape index: {}]
  %s3 = inlined_call_operand.hbm [shape: bf16[128,128], index: 3, kind: input, shape index: {}]
  %s4 = inlined_call_operand.vmem [shape: f32[1,128], index: 4, kind: input, shape index: {}]
  %s5 = inlined_call_operand.vmem [shape: f32[1,128], index: 5, kind: input, shape index: {}]
  %s6 = inlined_call_operand.<no memory space> [shape: f32[1], index: 6, kind: input, shape index: {}]
  %s7 = inlined_call_operand.vmem [shape: f32[8,1], index: 7, kind: output, shape index: {}]
  %s8 = sld [smem:[#allocation0]]
  $region50: #{tpu_custom_call.1} parent=0
    _
  %s10 = ssub.s32 1, %s8
  %s11 = scalar_select 0, %s10, %s8
  %12 = sst [smem:[#allocation2]] %s6
  $region1: #{tpu_custom_call.1} parent=0
    #allocation3 [shape = 'u8[8192]{0}', space=vmem, size = 0x2000, scoped, tag = 'input window, operand 0, single buffered']
    #allocation4 [shape = 's32[1]{0}', space=sflag, size = 0x4, scoped, tag = 'scoped memory for tpu_custom_call.1']
    #allocation5 [shape = 'u8[65536]{0}', space=vmem, size = 0x10000, scoped, tag = 'input window, operand 1, single buffered']
    #allocation6 [shape = 's32[1]{0}', space=sflag, size = 0x4, scoped, tag = 'scoped memory for tpu_custom_call.1']
    #allocation7 [shape = 'u8[32768]{0}', space=vmem, size = 0x8000, scoped, tag = 'input window, operand 3, single buffered']
    %13 = vsyncpa [#allocation4], 0
    %14 = vsyncpa [#allocation6], 0
    // Predicated region
    $region2: #{tpu_custom_call.1} parent=1 // pred_check
      _
    $region3: #{tpu_custom_call.1} parent=1 // pred_check_branch
      %16 = sbr.rel (0) target = $region5
    $region4: #{tpu_custom_call.1} parent=1 // pred_region
      %s18 = ssub.s32 256, 256
      %19 = vsyncadd [#allocation4], %s18
      %s21 = sshll.u32 [#allocation3], 4
      %s22 = int_to_ptr.vmem [resolvable:$true] %s21
      %24 = dma.hbm_to_vmem [thread:$0]  %s0, 256, %s22, [#allocation4]
    $region5: #{tpu_custom_call.1} parent=1 // pred_fallthru
      _
    // Predicated region
    $region6: #{tpu_custom_call.1} parent=1 // pred_check
      _
    $region7: #{tpu_custom_call.1} parent=1 // pred_check_branch
      %26 = sbr.rel (0) target = $region9
    $region8: #{tpu_custom_call.1} parent=1 // pred_region
      %s28 = ssub.s32 2048, 2048
      %29 = vsyncadd [#allocation6], %s28
      %s30 = sshll.u32 [#allocation5], 4
      %s31 = int_to_ptr.vmem [resolvable:$true] %s30
      %36 = dma.hbm_to_vmem [thread:$0]  %s1, 2048, %s31, [#allocation6], 64, 64, 4
    $region9: #{tpu_custom_call.1} parent=1 // pred_fallthru
      _
    // Predicated region
    $region10: #{tpu_custom_call.1} parent=1 // pred_check
      _
    $region11: #{tpu_custom_call.1} parent=1 // pred_check_branch
      %38 = sbr.rel (0) target = $region13
    $region12: #{tpu_custom_call.1} parent=1 // pred_region
      _
    $region13: #{tpu_custom_call.1} parent=1 // pred_fallthru
      _
    // Predicated region
    $region14: #{tpu_custom_call.1} parent=1 // pred_check
      _
    $region15: #{tpu_custom_call.1} parent=1 // pred_check_branch
      %40 = sbr.rel (0) target = $region17
    $region16: #{tpu_custom_call.1} parent=1 // pred_region
      %s42 = ssub.s32 1024, 1024
      %43 = vsyncadd [#allocation6], %s42
      %s44 = sshll.u32 [#allocation7], 4
      %s45 = int_to_ptr.vmem [resolvable:$true] %s44
      %50 = dma.hbm_to_vmem [thread:$0]  %s3, 1024, %s45, [#allocation6], 64, 64, 4
    $region17: #{tpu_custom_call.1} parent=1 // pred_fallthru
      _
    // Predicated region
    $region18: #{tpu_custom_call.1} parent=1 // pred_check
      _
    $region19: #{tpu_custom_call.1} parent=1 // pred_check_branch
      %52 = sbr.rel (0) target = $region21
    $region20: #{tpu_custom_call.1} parent=1 // pred_region
      _
    $region21: #{tpu_custom_call.1} parent=1 // pred_fallthru
      _
    // Predicated region
    $region22: #{tpu_custom_call.1} parent=1 // pred_check
      _
    $region23: #{tpu_custom_call.1} parent=1 // pred_check_branch
      %54 = sbr.rel (0) target = $region25
    $region24: #{tpu_custom_call.1} parent=1 // pred_region
      _
    $region25: #{tpu_custom_call.1} parent=1 // pred_fallthru
      _
    // Predicated region
    $region26: #{tpu_custom_call.1} parent=1 // pred_check
      _
    $region27: #{tpu_custom_call.1} parent=1 // pred_check_branch
      %56 = sbr.rel (0) target = $region29
    $region28: #{tpu_custom_call.1} parent=1 // pred_region
      _
    $region29: #{tpu_custom_call.1} parent=1 // pred_fallthru
      _
    // Predicated region
    $region30: #{tpu_custom_call.1} parent=1 // pred_check
      _
    $region31: #{tpu_custom_call.1} parent=1 // pred_check_branch
      %58 = sbr.rel (0) target = $region33
    $region32: #{tpu_custom_call.1} parent=1 // pred_region
      %59 = dma.done [#allocation4], 256
    $region33: #{tpu_custom_call.1} parent=1 // pred_fallthru
      _
    // Predicated region
    $region34: #{tpu_custom_call.1} parent=1 // pred_check
      _
    $region35: #{tpu_custom_call.1} parent=1 // pred_check_branch
      %61 = sbr.rel (0) target = $region37
    $region36: #{tpu_custom_call.1} parent=1 // pred_region
      %62 = dma.done [#allocation6], 2048
    $region37: #{tpu_custom_call.1} parent=1 // pred_fallthru
      _
    // Predicated region
    $region38: #{tpu_custom_call.1} parent=1 // pred_check
      _
    $region39: #{tpu_custom_call.1} parent=1 // pred_check_branch
      %64 = sbr.rel (0) target = $region41
    $region40: #{tpu_custom_call.1} parent=1 // pred_region
      %65 = dma.done [#allocation6], 1024
    $region41: #{tpu_custom_call.1} parent=1 // pred_fallthru
      _
    %v67 = vld [vmem:[#allocation3] sm:$0xff]
    %v68 = vld [vmem:[#allocation3 + $0x8] sm:$0xff]
    %v69 = vpack.c.bf16 %v67, %v67
    %v70 = vpack.c.bf16 %v68, %v68
    %v71 = vld [vmem:[#allocation5] sm:$0xf]
    %v72 = vld [vmem:[#allocation5 + $0x4] sm:$0xf]
    %v73 = vld [vmem:[#allocation5 + $0x8] sm:$0xf]
    %v74 = vld [vmem:[#allocation5 + $0xc] sm:$0xf]
    %v75 = vld [vmem:[#allocation5 + $0x10] sm:$0xf]
    %v76 = vld [vmem:[#allocation5 + $0x14] sm:$0xf]
    %v77 = vld [vmem:[#allocation5 + $0x18] sm:$0xf]
    %v78 = vld [vmem:[#allocation5 + $0x1c] sm:$0xf]
    %v79 = vld [vmem:[#allocation5 + $0x20] sm:$0xf]
    %v80 = vld [vmem:[#allocation5 + $0x24] sm:$0xf]
    %v81 = vld [vmem:[#allocation5 + $0x28] sm:$0xf]
    %v82 = vld [vmem:[#allocation5 + $0x2c] sm:$0xf]
    %v83 = vld [vmem:[#allocation5 + $0x30] sm:$0xf]
    %v84 = vld [vmem:[#allocation5 + $0x34] sm:$0xf]
    %v85 = vld [vmem:[#allocation5 + $0x38] sm:$0xf]
    %v86 = vld [vmem:[#allocation5 + $0x3c] sm:$0xf]
    %v87 = vld [vmem:[#allocation5 + $0x40] sm:$0xf]
    %v88 = vld [vmem:[#allocation5 + $0x44] sm:$0xf]
    %v89 = vld [vmem:[#allocation5 + $0x48] sm:$0xf]
    %v90 = vld [vmem:[#allocation5 + $0x4c] sm:$0xf]
    %v91 = vld [vmem:[#allocation5 + $0x50] sm:$0xf]
    %v92 = vld [vmem:[#allocation5 + $0x54] sm:$0xf]
    %v93 = vld [vmem:[#allocation5 + $0x58] sm:$0xf]
    %v94 = vld [vmem:[#allocation5 + $0x5c] sm:$0xf]
    %v95 = vld [vmem:[#allocation5 + $0x60] sm:$0xf]
    %v96 = vld [vmem:[#allocation5 + $0x64] sm:$0xf]
    %v97 = vld [vmem:[#allocation5 + $0x68] sm:$0xf]
    %v98 = vld [vmem:[#allocation5 + $0x6c] sm:$0xf]
    %v99 = vld [vmem:[#allocation5 + $0x70] sm:$0xf]
    %v100 = vld [vmem:[#allocation5 + $0x74] sm:$0xf]
    %v101 = vld [vmem:[#allocation5 + $0x78] sm:$0xf]
    %v102 = vld [vmem:[#allocation5 + $0x7c] sm:$0xf]
    %v103 = vld [vmem:[%s2] sm:$0x1]
    %v105 = vlaneseq
    %v106 = vshrl.u32 %v105, 7
    %v107 = vsub.s32 0, %v106
    %v108 = vrot.slane %v103, %v107
    %v142 = vunpack.c.l.b16 %v71
    %v143 = vunpack.c.l.b16 %v72
    %v144 = vunpack.c.l.b16 %v73
    %v145 = vunpack.c.l.b16 %v74
    %v146 = vunpack.c.l.b16 %v75
    %v147 = vunpack.c.l.b16 %v76
    %v148 = vunpack.c.l.b16 %v77
    %v149 = vunpack.c.l.b16 %v78
    %v150 = vunpack.c.l.b16 %v79
    %v151 = vunpack.c.l.b16 %v80
    %v152 = vunpack.c.l.b16 %v81
    %v153 = vunpack.c.l.b16 %v82
    %v154 = vunpack.c.l.b16 %v83
    %v155 = vunpack.c.l.b16 %v84
    %v156 = vunpack.c.l.b16 %v85
    %v157 = vunpack.c.l.b16 %v86
    %v158 = vunpack.c.l.b16 %v87
    %v159 = vunpack.c.l.b16 %v88
    %v160 = vunpack.c.l.b16 %v89
    %v161 = vunpack.c.l.b16 %v90
    %v162 = vunpack.c.l.b16 %v91
    %v163 = vunpack.c.l.b16 %v92
    %v164 = vunpack.c.l.b16 %v93
    %v165 = vunpack.c.l.b16 %v94
    %v166 = vunpack.c.l.b16 %v95
    %v167 = vunpack.c.l.b16 %v96
    %v168 = vunpack.c.l.b16 %v97
    %v169 = vunpack.c.l.b16 %v98
    %v170 = vunpack.c.l.b16 %v99
    %v171 = vunpack.c.l.b16 %v100
    %v172 = vunpack.c.l.b16 %v101
    %v173 = vunpack.c.l.b16 %v102
    %v174 = vpack.c.b16 %v143, %v142
    %v175 = vpack.c.b16 %v145, %v144
    %v176 = vpack.c.b16 %v147, %v146
    %v177 = vpack.c.b16 %v149, %v148
    %v178 = vpack.c.b16 %v151, %v150
    %v179 = vpack.c.b16 %v153, %v152
    %v180 = vpack.c.b16 %v155, %v154
    %v181 = vpack.c.b16 %v157, %v156
    %v182 = vpack.c.b16 %v159, %v158
    %v183 = vpack.c.b16 %v161, %v160
    %v184 = vpack.c.b16 %v163, %v162
    %v185 = vpack.c.b16 %v165, %v164
    %v186 = vpack.c.b16 %v167, %v166
    %v187 = vpack.c.b16 %v169, %v168
    %v188 = vpack.c.b16 %v171, %v170
    %v189 = vpack.c.b16 %v173, %v172
    %206 = vmatprep.subr.bf16.mxu0 0
    %207 = vmatpush1.bf16.msra.mxu0 %v174
    %208 = vmatprep.subr.bf16.mxu0 0
    %209 = vmatpush1.bf16.msra.mxu0 %v175
    %210 = vmatprep.subr.bf16.mxu0 0
    %211 = vmatpush1.bf16.msra.mxu0 %v176
    %212 = vmatprep.subr.bf16.mxu0 0
    %213 = vmatpush1.bf16.msra.mxu0 %v177
    %214 = vmatprep.subr.bf16.mxu0 0
    %215 = vmatpush1.bf16.msra.mxu0 %v178
    %216 = vmatprep.subr.bf16.mxu0 0
    %217 = vmatpush1.bf16.msra.mxu0 %v179
    %218 = vmatprep.subr.bf16.mxu0 0
    %219 = vmatpush1.bf16.msra.mxu0 %v180
    %220 = vmatprep.subr.bf16.mxu0 0
    %221 = vmatpush1.bf16.msra.mxu0 %v181
    %222 = vmatprep.subr.bf16.mxu0 0
    %223 = vmatpush1.bf16.msra.mxu0 %v182
    %224 = vmatprep.subr.bf16.mxu0 0
    %225 = vmatpush1.bf16.msra.mxu0 %v183
    %226 = vmatprep.subr.bf16.mxu0 0
    %227 = vmatpush1.bf16.msra.mxu0 %v184
    %228 = vmatprep.subr.bf16.mxu0 0
    %229 = vmatpush1.bf16.msra.mxu0 %v185
    %230 = vmatprep.subr.bf16.mxu0 0
    %231 = vmatpush1.bf16.msra.mxu0 %v186
    %232 = vmatprep.subr.bf16.mxu0 0
    %233 = vmatpush1.bf16.msra.mxu0 %v187
    %234 = vmatprep.subr.bf16.mxu0 0
    %235 = vmatpush1.bf16.msra.mxu0 %v188
    %236 = vmatprep.subr.bf16.mxu0 0
    %237 = vmatpush1.bf16.msra.mxu0 %v189
    %238 = vmatprep.mubr.bf16.mxu0 %v70
    %239 = vmatmul.mubr.bf16.gmra.mrb[0].mxu0 %v69
    %v240 = vpop.f32.mrb[0].mxu0
    %v241 = vadd.f32 %v108, %v240
    %v242 = vpop.f32.mrb[0].mxu0
    %v243 = vpop.f32.mrb[0].mxu0
    %v244 = vpop.f32.mrb[0].mxu0
    %245 = vdwg.mxu0
    %v246 = vmax.f32 %v241, 0.0
    %v247 = vpack.c.bf16 %v246, %v246
    %v248 = vld [vmem:[#allocation7] sm:$0xf]
    %v249 = vld [vmem:[#allocation7 + $0x4] sm:$0xf]
    %v250 = vld [vmem:[#allocation7 + $0x8] sm:$0xf]
    %v251 = vld [vmem:[#allocation7 + $0xc] sm:$0xf]
    %v252 = vld [vmem:[#allocation7 + $0x10] sm:$0xf]
    %v253 = vld [vmem:[#allocation7 + $0x14] sm:$0xf]
    %v254 = vld [vmem:[#allocation7 + $0x18] sm:$0xf]
    %v255 = vld [vmem:[#allocation7 + $0x1c] sm:$0xf]
    %v256 = vld [vmem:[#allocation7 + $0x20] sm:$0xf]
    %v257 = vld [vmem:[#allocation7 + $0x24] sm:$0xf]
    %v258 = vld [vmem:[#allocation7 + $0x28] sm:$0xf]
    %v259 = vld [vmem:[#allocation7 + $0x2c] sm:$0xf]
    %v260 = vld [vmem:[#allocation7 + $0x30] sm:$0xf]
    %v261 = vld [vmem:[#allocation7 + $0x34] sm:$0xf]
    %v262 = vld [vmem:[#allocation7 + $0x38] sm:$0xf]
    %v263 = vld [vmem:[#allocation7 + $0x3c] sm:$0xf]
    %v264 = vld [vmem:[%s4] sm:$0x1]
    %v266 = vlaneseq
    %v267 = vshrl.u32 %v266, 7
    %v268 = vsub.s32 0, %v267
    %v269 = vrot.slane %v264, %v268
    %v287 = vunpack.c.l.b16 %v248
    %v288 = vunpack.c.l.b16 %v249
    %v289 = vunpack.c.l.b16 %v250
    %v290 = vunpack.c.l.b16 %v251
    %v291 = vunpack.c.l.b16 %v252
    %v292 = vunpack.c.l.b16 %v253
    %v293 = vunpack.c.l.b16 %v254
    %v294 = vunpack.c.l.b16 %v255
    %v295 = vunpack.c.l.b16 %v256
    %v296 = vunpack.c.l.b16 %v257
    %v297 = vunpack.c.l.b16 %v258
    %v298 = vunpack.c.l.b16 %v259
    %v299 = vunpack.c.l.b16 %v260
    %v300 = vunpack.c.l.b16 %v261
    %v301 = vunpack.c.l.b16 %v262
    %v302 = vunpack.c.l.b16 %v263
    %v303 = vpack.c.b16 %v288, %v287
    %v304 = vpack.c.b16 %v290, %v289
    %v305 = vpack.c.b16 %v292, %v291
    %v306 = vpack.c.b16 %v294, %v293
    %v307 = vpack.c.b16 %v296, %v295
    %v308 = vpack.c.b16 %v298, %v297
    %v309 = vpack.c.b16 %v300, %v299
    %v310 = vpack.c.b16 %v302, %v301
    %319 = vmatprep.subr.bf16.mxu0 0
    %320 = vmatpush1.bf16.msra.mxu0 %v303
    %321 = vmatprep.subr.bf16.mxu0 0
    %322 = vmatpush1.bf16.msra.mxu0 %v304
    %323 = vmatprep.subr.bf16.mxu0 0
    %324 = vmatpush1.bf16.msra.mxu0 %v305
    %325 = vmatprep.subr.bf16.mxu0 0
    %326 = vmatpush1.bf16.msra.mxu0 %v306
    %327 = vmatprep.subr.bf16.mxu0 0
    %328 = vmatpush1.bf16.msra.mxu0 %v307
    %329 = vmatprep.subr.bf16.mxu0 0
    %330 = vmatpush1.bf16.msra.mxu0 %v308
    %331 = vmatprep.subr.bf16.mxu0 0
    %332 = vmatpush1.bf16.msra.mxu0 %v309
    %333 = vmatprep.subr.bf16.mxu0 0
    %334 = vmatpush1.bf16.msra.mxu0 %v310
    %335 = vmatprep.subr.bf16.mxu0 0
    %336 = vmatpush1.bf16.msra.mxu0 0
    %337 = vmatprep.subr.bf16.mxu0 0
    %338 = vmatpush1.bf16.msra.mxu0 0
    %339 = vmatprep.subr.bf16.mxu0 0
    %340 = vmatpush1.bf16.msra.mxu0 0
    %341 = vmatprep.subr.bf16.mxu0 0
    %342 = vmatpush1.bf16.msra.mxu0 0
    %343 = vmatprep.subr.bf16.mxu0 0
    %344 = vmatpush1.bf16.msra.mxu0 0
    %345 = vmatprep.subr.bf16.mxu0 0
    %346 = vmatpush1.bf16.msra.mxu0 0
    %347 = vmatprep.subr.bf16.mxu0 0
    %348 = vmatpush1.bf16.msra.mxu0 0
    %349 = vmatprep.subr.bf16.mxu0 0
    %350 = vmatpush1.bf16.msra.mxu0 0
    %351 = vmatprep.mubr.bf16.mxu0 0
    %352 = vmatmul.mubr.bf16.gmra.mrb[0].mxu0 %v247
    %v353 = vpop.f32.mrb[0].mxu0
    %v354 = vadd.f32 %v269, %v353
    %v355 = vpop.f32.mrb[0].mxu0
    %v356 = vpop.f32.mrb[0].mxu0
    %v357 = vpop.f32.mrb[0].mxu0
    %358 = vdwg.mxu0
    %v359 = vmax.f32 %v354, 0.0
    %v360 = vld [vmem:[%s5] sm:$0x1]
    %v362 = vlaneseq
    %v363 = vshrl.u32 %v362, 7
    %v364 = vsub.s32 0, %v363
    %v365 = vrot.slane %v360, %v364
    %v367 = vmul.f32 %v359, %v365
    %368 = vadd.xlane.f32.xlu0 %v367
    %v369 = vpop.xlane.xlu0 %368
    %s370 = sld [smem:[#allocation2]]
    %v371 = vstv %s370
    %v372 = vadd.f32 %v369, %v371
    %vm373 = vcmask 7168
    %374 = vst.msk [vmem:[%s7] sm:$0xff] %vm373, %v372
    // Predicated region
    $region42: #{tpu_custom_call.1} parent=1 // pred_check
      _
    $region43: #{tpu_custom_call.1} parent=1 // pred_check_branch
      %376 = sbr.rel (0) target = $region45
    $region44: #{tpu_custom_call.1} parent=1 // pred_region
      _
    $region45: #{tpu_custom_call.1} parent=1 // pred_fallthru
      _
    // Predicated region
    $region46: #{tpu_custom_call.1} parent=1 // pred_check
      _
    $region47: #{tpu_custom_call.1} parent=1 // pred_check_branch
      %378 = sbr.rel (0) target = $region49
    $region48: #{tpu_custom_call.1} parent=1 // pred_region
      _
    $region49: #{tpu_custom_call.1} parent=1 // pred_fallthru
      _
    %379 = vsyncpa [#allocation4], 1
    %380 = vsyncpa [#allocation6], 1

</llo_original>
